<compile_context>
chip_gen: v5e
topology: v5e:2x2
jax: 0.10.0
libtpu: 0.0.40
codegen_flags: <defaults>
</compile_context>

<pallas_src>
import jax
import jax.numpy as jnp
from jax.experimental import pallas as pl
from jax.experimental.pallas import tpu as pltpu


def fnet_kernel(f1_ref, out_ref):
    # f1_ref:  SMEM, shape (1,)       — scalar parameter F1
    # out_ref: VMEM, shape (tb, 2)    — one batch tile of the output
    tb, ncols = out_ref.shape
    neg_f1 = (-f1_ref[0]).astype(out_ref.dtype)
    col = jax.lax.broadcasted_iota(jnp.int32, (tb, ncols), dimension=1)
    zero = jnp.zeros((), dtype=out_ref.dtype)
    out_ref[...] = jnp.where(col == 1, neg_f1, zero)


def f_net_forward(t, coords, F1, *, block_rows=1024):
    """JAX wrapper mirroring F_Net.forward(t, coords).

    t is accepted for API parity but unused (as in the PyTorch module).
    coords: (bs, num_states) — only its static shape is used (values unread).
    F1:     (1,) float32 scalar parameter.
    returns (bs, 2) array of F1.dtype.
    """
    del t  # unused, same as PyTorch forward
    bs, _num_states = coords.shape
    out_dtype = F1.dtype

    # Tile the batch dimension.  If bs fits in one block use the full extent
    # (valid regardless of divisibility); otherwise use a multiple-of-8 tile.
    tb = bs if bs <= block_rows else block_rows
    grid = (pl.cdiv(bs, tb),)

    return pl.pallas_call(
        fnet_kernel,
        out_shape=jax.ShapeDtypeStruct((bs, 2), out_dtype),
        grid=grid,
        in_specs=[
            pl.BlockSpec(memory_space=pltpu.SMEM),  # F1 scalar (no DMA)
        ],
        out_specs=pl.BlockSpec((tb, 2), lambda i: (i, 0)),
        compiler_params=pltpu.CompilerParams(
            dimension_semantics=("parallel",),
        ),
    )(F1)


if __name__ == "__main__":
    key = jax.random.PRNGKey(0)
    k_f1, k_coords = jax.random.split(key)

    # Deterministic "parameter" init: F1 = 0.1 * randn(1)
    F1 = 0.1 * jax.random.normal(k_f1, (1,), dtype=jnp.float32)

    # Small example input consistent with the forward: coords (bs, num_states)
    bs, num_states = 8, 2
    coords = jax.random.normal(k_coords, (bs, num_states), dtype=jnp.float32)
    t = jnp.zeros((), dtype=jnp.float32)  # unused, parity with forward(t, coords)

    F = f_net_forward(t, coords, F1)
    F = jax.block_until_ready(F)

    ref = jnp.zeros((bs, 2), dtype=jnp.float32).at[:, 1].add(-F1[0])
    assert F.shape == (bs, 2)
    assert F.dtype == jnp.float32
    assert jnp.allclose(F, ref, atol=1e-6), (F, ref)

    # Also exercise the tiled (multi-block) path with a small block size.
    bs2 = 16
    coords2 = jax.random.normal(k_coords, (bs2, num_states), dtype=jnp.float32)
    F2 = jax.block_until_ready(f_net_forward(t, coords2, F1, block_rows=8))
    ref2 = jnp.zeros((bs2, 2), dtype=jnp.float32).at[:, 1].add(-F1[0])
    assert F2.shape == (bs2, 2)
    assert jnp.allclose(F2, ref2, atol=1e-6), (F2, ref2)

    print("KERNEL_OK")
</pallas_src>

<mosaic_0001>
module attributes {stable_mosaic.version = 11 : i64} {
  func.func @fnet_kernel(%arg0: i32, %arg1: memref<1xf32, #tpu.memory_space<smem>>, %arg2: memref<8x2xf32, #tpu.memory_space<vmem>>) attributes {dimension_semantics = [#tpu.dimension_semantics<parallel>], iteration_bounds = array<i64: 1>, scalar_prefetch = 0 : i64, scratch_operands = 0 : i64, tpu.core_type = #tpu.core_type<tc>, window_params = [{transform_indices = @transform_0, window_bounds = array<i64: 1>}, {transform_indices = @transform_1, window_bounds = array<i64: 8, 2>}]} {
    %c0 = arith.constant 0 : index
    %0 = memref.load %arg1[%c0] : memref<1xf32, #tpu.memory_space<smem>>
    %cst = arith.constant 0.000000e+00 : f32
    %1 = arith.subf %cst, %0 : f32
    %2 = tpu.iota {dimensions = array<i32: 1>} : vector<8x2xi32>
    %c1_i32 = arith.constant 1 : i32
    %3 = vector.broadcast %c1_i32 : i32 to vector<8x2xi32>
    %4 = arith.cmpi eq, %2, %3 : vector<8x2xi32>
    %cst_0 = arith.constant 0.000000e+00 : f32
    %5 = vector.broadcast %1 : f32 to vector<8x2xf32>
    %6 = vector.broadcast %cst_0 : f32 to vector<8x2xf32>
    %7 = arith.select %4, %5, %6 : vector<8x2xi1>, vector<8x2xf32>
    %c0_1 = arith.constant 0 : index
    %c0_2 = arith.constant 0 : index
    %8 = vector.load %arg2[%c0_1, %c0_2] : memref<8x2xf32, #tpu.memory_space<vmem>>, vector<8x2xf32>
    tpu.vector_store %arg2[%c0_1, %c0_2], %7 {strides = array<i32>} : memref<8x2xf32, #tpu.memory_space<vmem>>, vector<8x2xf32>,
    return
  }
  func.func @transform_0(%arg0: i32) -> i32 {
    %c0_i32 = arith.constant 0 : i32
    %c0_i32_0 = arith.constant 0 : i32
    return %c0_i32 : i32
  }
  func.func @transform_1(%arg0: i32) -> (i32, i32) {
    %c0_i32 = arith.constant 0 : i32
    %c0_i32_0 = arith.constant 0 : i32
    return %arg0, %c0_i32 : i32, i32
  }
}

</mosaic_0001>

<llo_original>
// kernel: tpu_custom_call.1
$region0: #{tpu_custom_call.1}
  #allocation0 [shape = 'u32[]', space=smem, size = 0x4, offset = 0x4, fixed_abs, tag = 'smem constant byte address 0x4 - core index']
  #allocation1 [shape = 'u32[72,128]{1,0:T(1,128)}', space=vmem, size = 0x9000, scoped, tag = 'internal scratch']
  #allocation2 [shape = 'f32[1]{0:T(128)S(6)}', space=smem, size = 0x200, scoped, tag = 'scoped memory for tpu_custom_call.1']
  %s0 = inlined_call_operand.<no memory space> [shape: f32[1], index: 0, kind: input, shape index: {}]
  %s1 = inlined_call_operand.vmem [shape: f32[8,2], index: 1, kind: output, shape index: {}]
  %s2 = sld [smem:[#allocation0]]
  $region14: #{tpu_custom_call.1} parent=0
    _
  %s4 = ssub.s32 1, %s2
  %s5 = scalar_select 0, %s4, %s2
  %6 = sst [smem:[#allocation2]] %s0
  // Predicated region
  $region2: #{tpu_custom_call.1} parent=0 // pred_check
    _
  $region3: #{tpu_custom_call.1} parent=0 // pred_check_branch
    %8 = sbr.rel (0) target = $region5
  $region4: #{tpu_custom_call.1} parent=0 // pred_region
    _
  $region5: #{tpu_custom_call.1} parent=0 // pred_fallthru
    _
  %s9 = sld [smem:[#allocation2]]
  %s10 = ssub.f32 0.0, %s9
  %v11 = vlaneseq
  %v12 = vand.u32 %v11, 127
  %vm13 = vcmp.eq.s32.totalorder %v12, 1
  %v14 = vstv %s10
  %v15 = vsel %vm13, %v14, 0.0
  %vm16 = vcmask 15360
  %17 = vst.msk [vmem:[%s1] sm:$0xff] %vm16, %v15
  // Predicated region
  $region6: #{tpu_custom_call.1} parent=0 // pred_check
    _
  $region7: #{tpu_custom_call.1} parent=0 // pred_check_branch
    %19 = sbr.rel (0) target = $region9
  $region8: #{tpu_custom_call.1} parent=0 // pred_region
    _
  $region9: #{tpu_custom_call.1} parent=0 // pred_fallthru
    _
  // Predicated region
  $region10: #{tpu_custom_call.1} parent=0 // pred_check
    _
  $region11: #{tpu_custom_call.1} parent=0 // pred_check_branch
    %21 = sbr.rel (0) target = $region13
  $region12: #{tpu_custom_call.1} parent=0 // pred_region
    _
  $region13: #{tpu_custom_call.1} parent=0 // pred_fallthru
    _

</llo_original>
